<compile_context>
chip_gen: v6e
topology: v6e:2x2x1
jax: 0.10.0
libtpu: 0.0.40
codegen_flags: <defaults>
</compile_context>

<pallas_src>
import jax
import jax.numpy as jnp
from jax.experimental import pallas as pl
from jax.experimental.pallas import tpu as pltpu


def identity_map(x: jax.Array) -> jax.Array:
    """IdentityMap.forward(x) -> x. Zero-cost fast path (no kernel launched)."""
    return x


def _single_dma_kernel(x_hbm_ref, o_hbm_ref, sem):
    # One DMA descriptor over the whole (contiguous) array: HBM -> HBM.
    cp = pltpu.make_async_copy(x_hbm_ref, o_hbm_ref, sem)
    cp.start()
    cp.wait()


def _make_chunked_dma_kernel(chunks):
    # `chunks` is a static tuple of (start, size) along axis 0. Start every
    # chunk's DMA first, then wait on all of them, so the copies overlap.
    def kernel(x_hbm_ref, o_hbm_ref, sems):
        copies = []
        for idx, (start, size) in enumerate(chunks):
            cp = pltpu.make_async_copy(
                x_hbm_ref.at[pl.ds(start, size)],
                o_hbm_ref.at[pl.ds(start, size)],
                sems.at[idx],
            )
            cp.start()
            copies.append(cp)
        for cp in copies:
            cp.wait()

    return kernel


def identity_map_materialized(x: jax.Array) -> jax.Array:
    """Identity that materializes a fresh HBM buffer via a direct HBM->HBM DMA."""
    if x.size == 0:
        return x  # nothing to copy; identity semantics preserved

    orig_shape = x.shape
    work = x if x.ndim >= 1 else x.reshape(1)  # DMA needs at least 1-D refs

    itemsize = jnp.dtype(work.dtype).itemsize
    total_bytes = work.size * itemsize

    # For large arrays, split the leading axis into up to 4 chunks so multiple
    # DMA engines run concurrently; otherwise a single descriptor suffices.
    leading = work.shape[0]
    n_chunks = min(4, leading) if (total_bytes >= (8 << 20) and leading >= 2) else 1

    cost = pl.CostEstimate(
        flops=0, transcendentals=0, bytes_accessed=2 * total_bytes
    )

    if n_chunks == 1:
        y = pl.pallas_call(
            _single_dma_kernel,
            out_shape=jax.ShapeDtypeStruct(work.shape, work.dtype),
            in_specs=[pl.BlockSpec(memory_space=pl.ANY)],
            out_specs=pl.BlockSpec(memory_space=pl.ANY),
            scratch_shapes=[pltpu.SemaphoreType.DMA(())],
            cost_estimate=cost,
        )(work)
    else:
        base, rem = divmod(leading, n_chunks)
        chunks = []
        start = 0
        for c in range(n_chunks):
            size = base + (1 if c < rem else 0)
            if size > 0:
                chunks.append((start, size))
            start += size
        chunks = tuple(chunks)
        y = pl.pallas_call(
            _make_chunked_dma_kernel(chunks),
            out_shape=jax.ShapeDtypeStruct(work.shape, work.dtype),
            in_specs=[pl.BlockSpec(memory_space=pl.ANY)],
            out_specs=pl.BlockSpec(memory_space=pl.ANY),
            scratch_shapes=[pltpu.SemaphoreType.DMA((len(chunks),))],
            cost_estimate=cost,
        )(work)

    return y.reshape(orig_shape)


# The module exposes a config property; no parameters exist, so nothing to init.
IDENTITY_MAP_CONFIG = {"mm_projector_type": "identity"}


if __name__ == "__main__":
    key = jax.random.PRNGKey(0)
    B, S, H = 2, 8, 32  # small shapes: batch=2, seq=8, hidden=32
    x = jax.random.normal(key, (B, S, H), dtype=jnp.float32)

    # Fast path: the actual IdentityMap.forward semantics (returns x as-is).
    y_fast = identity_map(x)
    assert y_fast is x

    # Pallas DMA-copy path: direct HBM->HBM copy, any shape/dtype.
    y = identity_map_materialized(x)
    jax.block_until_ready(y)
    assert y.shape == x.shape and y.dtype == x.dtype
    assert bool(jnp.array_equal(y, x))

    # Odd (non-128-multiple) shape + sub-32-bit dtype: the DMA path is
    # shape/divisibility agnostic, so this exercises the old fallback case.
    x_odd = jax.random.normal(jax.random.PRNGKey(1), (3, 7, 5)).astype(jnp.bfloat16)
    y_odd = identity_map_materialized(x_odd)
    jax.block_until_ready(y_odd)
    assert y_odd.shape == x_odd.shape and y_odd.dtype == x_odd.dtype
    assert bool(jnp.array_equal(y_odd, x_odd))

    print("KERNEL_OK")
</pallas_src>

<mosaic_0001>
module attributes {stable_mosaic.version = 11 : i64} {
  func.func @_single_dma_kernel(%arg0: memref<2x8x32xf32, #tpu.memory_space<any>>, %arg1: memref<2x8x32xf32, #tpu.memory_space<any>>, %arg2: memref<!tpu.dma_semaphore, #tpu.memory_space<semaphore_mem>>) attributes {dimension_semantics = [], scalar_prefetch = 0 : i64, scratch_operands = 1 : i64, tpu.core_type = #tpu.core_type<tc>} {
    tpu.enqueue_dma source(%arg0 : memref<2x8x32xf32, #tpu.memory_space<any>>) target(%arg1 : memref<2x8x32xf32, #tpu.memory_space<any>>) target_semaphore(%arg2 : memref<!tpu.dma_semaphore, #tpu.memory_space<semaphore_mem>>)
    tpu.wait_dma2 semaphore(%arg2 : memref<!tpu.dma_semaphore, #tpu.memory_space<semaphore_mem>>) src(%arg0 : memref<2x8x32xf32, #tpu.memory_space<any>>) dst(%arg1 : memref<2x8x32xf32, #tpu.memory_space<any>>)
    return
  }
}

</mosaic_0001>

<llo_original>
// kernel: tpu_custom_call.1
$region0: #{tpu_custom_call.1}
  #allocation0 [shape = 'u32[]', space=smem, size = 0x4, offset = 0x4, fixed_abs, tag = 'smem constant byte address 0x4 - core index']
  #allocation1 [shape = 'u32[144,128]{1,0:T(1,128)}', space=vmem, size = 0x12000, scoped, tag = 'internal scratch']
  #allocation2 [shape = 's32[1]{0}', space=sflag, size = 0x4, scoped, tag = 'scratch operand']
  #allocation3 [shape = 's32[]', space=sflag, size = 0x4, offset = 0, fixed_abs, tag = 'sflag constant byte address 0x0 - dummy sync flag']
  #allocation4 [shape = 'u32[0]{0}', space=smem, size = 0, offset = 0, fixed_abs, tag = 'smem constant byte address 0x0 - null']
  %s0 = inlined_call_operand.hbm [shape: f32[2,8,32], index: 0, kind: input, shape index: {}]
  %s1 = inlined_call_operand.hbm [shape: f32[2,8,32], index: 1, kind: output, shape index: {}]
  %s2 = sld [smem:[#allocation0]]
  $region2: #{tpu_custom_call.1} parent=0
    _
  %s4 = ssub.s32 1, %s2
  %s5 = scalar_select 0, %s4, %s2
  %s7 = sshll.u32 1, 14
  %s8 = sxor.u32 4294967295, %s7
  %12 = dma.general %s0, 256, %s1, [#allocation2], 131072, [#allocation4], 0, 0
  %s13 = smul.u32 2, 8
  %s14 = smul.u32 %s13, 1
  %s15 = sshll.u32 %s14, 4
  %16 = dma.done [#allocation2], %s15
  %17 = vsyncmov [#allocation2]
  %s18 = vpop.sfrf %17
  %p19 = scmp.eq.s32.totalorder %s18, 0
  %p20 = pneg %p19
  %22 = shalt.err (%p20)

</llo_original>
